<compile_context>
chip_gen: v6e
topology: v6e:2x2x1
jax: 0.10.0
libtpu: 0.0.40
codegen_flags: <defaults>
</compile_context>

<pallas_src>
import math
import functools

import jax
import jax.numpy as jnp
from jax.experimental import pallas as pl
from jax.experimental.pallas import tpu as pltpu

EPS = 1e-5


def _round_up(x, m):
    return ((x + m - 1) // m) * m


def _layernorm_f32(x, g, b):
    """PyTorch nn.LayerNorm: biased variance over the last axis, f32 math."""
    mu = jnp.mean(x, axis=-1, keepdims=True)
    xc = x - mu
    var = jnp.mean(xc * xc, axis=-1, keepdims=True)
    return xc * jax.lax.rsqrt(var + EPS) * g + b


# ---------------------------------------------------------------------------
# Fused kernel: shared LayerNorm on x1 & x2 + cross-attention
#   out = softmax((LN(x1) @ LN(x2)^T) / sqrt(D)) @ LN(x2)
# Grid = (batch, query-tile).  LN(x2) is cached per batch in VMEM scratch.
# ---------------------------------------------------------------------------
def _fused_prenorm_cross_kernel(x1_ref, x2_ref, gq_ref, bq_ref, g_ref, b_ref,
                                o_ref, *scratch, cache_kv, mxu_dtype):
    qi = pl.program_id(1)

    # Query LayerNorm; the 1/sqrt(D) attention scale is pre-folded into gq/bq.
    gq = gq_ref[...].astype(jnp.float32)
    bq = bq_ref[...].astype(jnp.float32)
    q = _layernorm_f32(x1_ref[...].astype(jnp.float32), gq, bq).astype(mxu_dtype)

    if cache_kv:
        kv_cache_ref = scratch[0]

        @pl.when(qi == 0)
        def _():
            g = g_ref[...].astype(jnp.float32)
            b = b_ref[...].astype(jnp.float32)
            kv_cache_ref[...] = _layernorm_f32(
                x2_ref[...].astype(jnp.float32), g, b).astype(mxu_dtype)

        kv = kv_cache_ref[...]                                  # (N2, D)
    else:
        g = g_ref[...].astype(jnp.float32)
        b = b_ref[...].astype(jnp.float32)
        kv = _layernorm_f32(
            x2_ref[...].astype(jnp.float32), g, b).astype(mxu_dtype)

    # Scores: contract the last dims directly (no kv.T / XLU transpose).
    s = jax.lax.dot_general(
        q, kv, (((1,), (1,)), ((), ())),
        preferred_element_type=jnp.float32)                     # (TQ, N2) f32

    # Softmax statistics in f32; exp input in bf16 only on the bf16 path
    # (lowers EUP pressure on v6e/v7x; Mosaic upcasts on v5e).
    m = jnp.max(s, axis=-1, keepdims=True)
    exp_dtype = jnp.bfloat16 if mxu_dtype == jnp.bfloat16 else jnp.float32
    p = jnp.exp((s - m).astype(exp_dtype))
    denom = jnp.sum(p.astype(jnp.float32), axis=-1, keepdims=True)
    # NOTE: approximate reciprocal (EUP) -> softmax denominator is approximate.
    inv = pl.reciprocal(denom, approx=True)

    o = jnp.dot(p.astype(mxu_dtype), kv,
                preferred_element_type=jnp.float32) * inv       # (TQ, D) f32
    o_ref[...] = o.astype(o_ref.dtype)


# ---------------------------------------------------------------------------
# Generation-aware sizing helpers
# ---------------------------------------------------------------------------
def _vmem_capacity_bytes():
    try:
        cap = getattr(pltpu.get_tpu_info(), "vmem_capacity_bytes", None)
        if cap:
            return int(cap)
    except Exception:
        pass
    return 64 * 1024 * 1024  # conservative (v7x-safe) fallback


def _derive_query_tile(n1, n2, d, in_bytes, out_bytes, mxu_bytes,
                       vmem_budget, kv_bufs):
    """Largest multiple-of-8 query tile whose working set fits the budget."""
    fixed = kv_bufs * n2 * d * in_bytes + n2 * d * mxu_bytes + 8 * d * 4
    # per query row: 2x pipelined input + 2x output buffers, f32 LN/q temps,
    # f32 score tile + exp tile (+ slack).
    per_row = (2 * in_bytes + 2 * out_bytes + 8) * d + 12 * n2
    avail = int(vmem_budget * 0.8) - fixed
    tq = max(avail // max(per_row, 1), 8)
    tq = min(int(tq), 1024)
    tq = max((tq // 8) * 8, 8)
    tq = min(tq, _round_up(n1, 8))   # never pad n1 beyond the next multiple of 8
    return max(tq, 8)


# ---------------------------------------------------------------------------
# PreNormCross forward: fn(norm(x1), norm(x2)) -- single fused pallas_call
# ---------------------------------------------------------------------------
def pre_norm_cross_forward(x1, x2, gamma, beta, *, mxu_bf16=None, query_tile=None):
    B, N1, D = x1.shape
    B2, N2, D2 = x2.shape
    assert B == B2 and D == D2, "batch / embedding dims must match"
    assert x1.dtype == x2.dtype, "x1 and x2 must share a dtype"

    if mxu_bf16 is None:
        mxu_bf16 = (x1.dtype == jnp.bfloat16)
    mxu_dtype = jnp.bfloat16 if mxu_bf16 else jnp.float32

    in_bytes = jnp.dtype(x1.dtype).itemsize
    mxu_bytes = jnp.dtype(mxu_dtype).itemsize

    # VMEM budget by generation: ~48 MiB on v7x (64 MiB physical),
    # ~96 MiB on v5e/v6e (128 MiB physical).
    vmem_cap = _vmem_capacity_bytes()
    vmem_limit = min(vmem_cap * 3 // 4, 100 * 1024 * 1024)

    # Single-buffer the KV block on small-VMEM chips: its block index only
    # changes on the batch axis, so the exposed DMA is once per batch.
    use_single_kv_buffer = (vmem_cap <= 64 * 1024 * 1024) and hasattr(pl, "Buffered")
    kv_bufs = 1 if use_single_kv_buffer else 2

    if query_tile is None:
        tq = _derive_query_tile(N1, N2, D, in_bytes, in_bytes, mxu_bytes,
                                vmem_limit, kv_bufs)
    else:
        tq = max((int(query_tile) // 8) * 8, 8)

    # Pad N1 to a multiple of the (multiple-of-8) query tile; padded zero rows
    # normalize to finite values and are sliced off after the call.
    n1_pad = _round_up(N1, tq)
    x1_p = x1 if n1_pad == N1 else jnp.pad(x1, ((0, 0), (0, n1_pad - N1), (0, 0)))
    nq = n1_pad // tq

    cache_kv = nq > 1

    # Fold 1/sqrt(D) into the query LayerNorm parameters (exact, host-side).
    scale = 1.0 / math.sqrt(D)
    g32 = gamma.astype(jnp.float32).reshape(1, D)
    b32 = beta.astype(jnp.float32).reshape(1, D)
    gq = g32 * scale
    bq = b32 * scale

    kernel = functools.partial(_fused_prenorm_cross_kernel,
                               cache_kv=cache_kv, mxu_dtype=mxu_dtype)

    kv_spec_kwargs = {}
    if use_single_kv_buffer:
        kv_spec_kwargs["pipeline_mode"] = pl.Buffered(1)

    scratch_shapes = [pltpu.VMEM((N2, D), mxu_dtype)] if cache_kv else []

    out = pl.pallas_call(
        kernel,
        out_shape=jax.ShapeDtypeStruct((B, n1_pad, D), x1.dtype),
        grid_spec=pltpu.PrefetchScalarGridSpec(
            num_scalar_prefetch=0,
            grid=(B, nq),
            in_specs=[
                # query tile (squeezed batch dim)
                pl.BlockSpec((None, tq, D), lambda bi, qi: (bi, qi, 0)),
                # full key/value sequence for this batch element
                pl.BlockSpec((None, N2, D), lambda bi, qi: (bi, 0, 0),
                             **kv_spec_kwargs),
                # LayerNorm params: scaled (query) and plain (kv) gamma/beta
                pl.BlockSpec((1, D), lambda bi, qi: (0, 0)),
                pl.BlockSpec((1, D), lambda bi, qi: (0, 0)),
                pl.BlockSpec((1, D), lambda bi, qi: (0, 0)),
                pl.BlockSpec((1, D), lambda bi, qi: (0, 0)),
            ],
            out_specs=pl.BlockSpec((None, tq, D), lambda bi, qi: (bi, qi, 0)),
            scratch_shapes=scratch_shapes,
        ),
        compiler_params=pltpu.CompilerParams(
            # query axis must be sequential when the LN(kv) scratch carries
            # across query tiles; batch stays parallel (megacore sharding).
            dimension_semantics=("parallel",
                                 "arbitrary" if cache_kv else "parallel"),
            vmem_limit_bytes=int(vmem_limit),
        ),
    )(x1_p, x2, gq, bq, g32, b32)

    return out[:, :N1, :] if n1_pad != N1 else out


# ---------------------------------------------------------------------------
# Pure-JAX reference (cheap sanity check)
# ---------------------------------------------------------------------------
def _reference(x1, x2, gamma, beta):
    def ln(x):
        mu = jnp.mean(x, axis=-1, keepdims=True)
        var = jnp.mean((x - mu) ** 2, axis=-1, keepdims=True)
        return (x - mu) * jax.lax.rsqrt(var + EPS) * gamma + beta

    a, b = ln(x1), ln(x2)
    D = a.shape[-1]
    s = jnp.einsum("bqd,bkd->bqk", a, b) / math.sqrt(D)
    p = jax.nn.softmax(s, axis=-1)
    return jnp.einsum("bqk,bkd->bqd", p, b)


if __name__ == "__main__":
    key = jax.random.PRNGKey(0)
    k1, k2, k3, k4 = jax.random.split(key, 4)

    # ---- Test 1: single query tile (no KV-cache path), f32 ----------------
    B, N1, N2, D = 2, 8, 16, 32
    x1 = jax.random.normal(k1, (B, N1, D), dtype=jnp.float32)
    x2 = jax.random.normal(k2, (B, N2, D), dtype=jnp.float32)
    gamma = 1.0 + 0.1 * jax.random.normal(k3, (D,), dtype=jnp.float32)
    beta = 0.1 * jax.random.normal(k4, (D,), dtype=jnp.float32)

    out = jax.block_until_ready(pre_norm_cross_forward(x1, x2, gamma, beta))
    assert out.shape == (B, N1, D)
    ref = _reference(x1, x2, gamma, beta)
    # Tolerance accommodates the approximate (EUP) softmax reciprocal.
    assert jnp.allclose(out, ref, atol=2e-3, rtol=2e-3), "mismatch (test 1)"

    # ---- Test 2: odd N1 (padding) + multiple query tiles (cached LN(kv)) --
    N1b = 13
    x1b = jax.random.normal(k1, (B, N1b, D), dtype=jnp.float32)
    outb = jax.block_until_ready(
        pre_norm_cross_forward(x1b, x2, gamma, beta, query_tile=8))
    assert outb.shape == (B, N1b, D)
    refb = _reference(x1b, x2, gamma, beta)
    assert jnp.allclose(outb, refb, atol=2e-3, rtol=2e-3), "mismatch (test 2)"

    # ---- Test 3: bf16 inputs (bf16 MXU + bf16 exp path) -------------------
    x1c = x1.astype(jnp.bfloat16)
    x2c = x2.astype(jnp.bfloat16)
    outc = jax.block_until_ready(
        pre_norm_cross_forward(x1c, x2c, gamma, beta))
    assert outc.shape == (B, N1, D)
    assert bool(jnp.max(jnp.abs(outc.astype(jnp.float32) - ref)) < 1e-1), \
        "mismatch (test 3, bf16 smoke)"

    print("KERNEL_OK")
</pallas_src>

<mosaic_0001>
module attributes {stable_mosaic.version = 11 : i64} {
  func.func @_fused_prenorm_cross_kernel(%arg0: i32, %arg1: i32, %arg2: memref<1x8x32xf32, #tpu.memory_space<vmem>>, %arg3: memref<1x16x32xf32, #tpu.memory_space<vmem>>, %arg4: memref<1x32xf32, #tpu.memory_space<vmem>>, %arg5: memref<1x32xf32, #tpu.memory_space<vmem>>, %arg6: memref<1x32xf32, #tpu.memory_space<vmem>>, %arg7: memref<1x32xf32, #tpu.memory_space<vmem>>, %arg8: memref<1x8x32xf32, #tpu.memory_space<vmem>>) attributes {dimension_semantics = [#tpu.dimension_semantics<parallel>, #tpu.dimension_semantics<parallel>], iteration_bounds = array<i64: 2, 1>, scalar_prefetch = 0 : i64, scratch_operands = 0 : i64, tpu.core_type = #tpu.core_type<tc>, window_params = [{transform_indices = @transform_0, window_bounds = array<i64: 1, 8, 32>}, {pipeline_mode = #tpu.pipeline_mode<synchronous>, transform_indices = @transform_1, window_bounds = array<i64: 1, 16, 32>}, {pipeline_mode = #tpu.pipeline_mode<synchronous>, transform_indices = @transform_2, window_bounds = array<i64: 1, 32>}, {pipeline_mode = #tpu.pipeline_mode<synchronous>, transform_indices = @transform_3, window_bounds = array<i64: 1, 32>}, {pipeline_mode = #tpu.pipeline_mode<synchronous>, transform_indices = @transform_4, window_bounds = array<i64: 1, 32>}, {pipeline_mode = #tpu.pipeline_mode<synchronous>, transform_indices = @transform_5, window_bounds = array<i64: 1, 32>}, {transform_indices = @transform_6, window_bounds = array<i64: 1, 8, 32>}]} {
    %c0 = arith.constant 0 : index
    %c0_0 = arith.constant 0 : index
    %0 = vector.load %arg4[%c0, %c0_0] : memref<1x32xf32, #tpu.memory_space<vmem>>, vector<1x32xf32>
    %c0_1 = arith.constant 0 : index
    %c0_2 = arith.constant 0 : index
    %1 = vector.load %arg5[%c0_1, %c0_2] : memref<1x32xf32, #tpu.memory_space<vmem>>, vector<1x32xf32>
    %c0_3 = arith.constant 0 : index
    %c0_4 = arith.constant 0 : index
    %c0_5 = arith.constant 0 : index
    %2 = vector.load %arg2[%c0_3, %c0_4, %c0_5] : memref<1x8x32xf32, #tpu.memory_space<vmem>>, vector<1x8x32xf32>
    %3 = vector.shape_cast %2 : vector<1x8x32xf32> to vector<8x32xf32>
    %cst = arith.constant dense<0.000000e+00> : vector<8xf32>
    %4 = vector.multi_reduction <add>, %3, %cst [1] : vector<8x32xf32> to vector<8xf32>
    %5 = vector.shape_cast %4 : vector<8xf32> to vector<8x1xf32>
    %cst_6 = arith.constant 3.200000e+01 : f32
    %6 = vector.broadcast %cst_6 : f32 to vector<8x1xf32>
    %7 = arith.divf %5, %6 : vector<8x1xf32>
    %8 = vector.broadcast %7 : vector<8x1xf32> to vector<8x32xf32>
    %9 = arith.subf %3, %8 : vector<8x32xf32>
    %10 = arith.mulf %9, %9 : vector<8x32xf32>
    %cst_7 = arith.constant dense<0.000000e+00> : vector<8xf32>
    %11 = vector.multi_reduction <add>, %10, %cst_7 [1] : vector<8x32xf32> to vector<8xf32>
    %12 = vector.shape_cast %11 : vector<8xf32> to vector<8x1xf32>
    %cst_8 = arith.constant 3.200000e+01 : f32
    %13 = vector.broadcast %cst_8 : f32 to vector<8x1xf32>
    %14 = arith.divf %12, %13 : vector<8x1xf32>
    %cst_9 = arith.constant 9.99999974E-6 : f32
    %15 = vector.broadcast %cst_9 : f32 to vector<8x1xf32>
    %16 = arith.addf %14, %15 : vector<8x1xf32>
    %17 = math.rsqrt %16 : vector<8x1xf32>
    %18 = vector.broadcast %17 : vector<8x1xf32> to vector<8x32xf32>
    %19 = arith.mulf %9, %18 : vector<8x32xf32>
    %20 = vector.broadcast %0 : vector<1x32xf32> to vector<8x32xf32>
    %21 = arith.mulf %19, %20 : vector<8x32xf32>
    %22 = vector.broadcast %1 : vector<1x32xf32> to vector<8x32xf32>
    %23 = arith.addf %21, %22 : vector<8x32xf32>
    %c0_10 = arith.constant 0 : index
    %c0_11 = arith.constant 0 : index
    %24 = vector.load %arg6[%c0_10, %c0_11] : memref<1x32xf32, #tpu.memory_space<vmem>>, vector<1x32xf32>
    %c0_12 = arith.constant 0 : index
    %c0_13 = arith.constant 0 : index
    %25 = vector.load %arg7[%c0_12, %c0_13] : memref<1x32xf32, #tpu.memory_space<vmem>>, vector<1x32xf32>
    %c0_14 = arith.constant 0 : index
    %c0_15 = arith.constant 0 : index
    %c0_16 = arith.constant 0 : index
    %26 = vector.load %arg3[%c0_14, %c0_15, %c0_16] : memref<1x16x32xf32, #tpu.memory_space<vmem>>, vector<1x16x32xf32>
    %27 = vector.shape_cast %26 : vector<1x16x32xf32> to vector<16x32xf32>
    %cst_17 = arith.constant dense<0.000000e+00> : vector<16xf32>
    %28 = vector.multi_reduction <add>, %27, %cst_17 [1] : vector<16x32xf32> to vector<16xf32>
    %29 = vector.shape_cast %28 : vector<16xf32> to vector<16x1xf32>
    %cst_18 = arith.constant 3.200000e+01 : f32
    %30 = vector.broadcast %cst_18 : f32 to vector<16x1xf32>
    %31 = arith.divf %29, %30 : vector<16x1xf32>
    %32 = vector.broadcast %31 : vector<16x1xf32> to vector<16x32xf32>
    %33 = arith.subf %27, %32 : vector<16x32xf32>
    %34 = arith.mulf %33, %33 : vector<16x32xf32>
    %cst_19 = arith.constant dense<0.000000e+00> : vector<16xf32>
    %35 = vector.multi_reduction <add>, %34, %cst_19 [1] : vector<16x32xf32> to vector<16xf32>
    %36 = vector.shape_cast %35 : vector<16xf32> to vector<16x1xf32>
    %cst_20 = arith.constant 3.200000e+01 : f32
    %37 = vector.broadcast %cst_20 : f32 to vector<16x1xf32>
    %38 = arith.divf %36, %37 : vector<16x1xf32>
    %cst_21 = arith.constant 9.99999974E-6 : f32
    %39 = vector.broadcast %cst_21 : f32 to vector<16x1xf32>
    %40 = arith.addf %38, %39 : vector<16x1xf32>
    %41 = math.rsqrt %40 : vector<16x1xf32>
    %42 = vector.broadcast %41 : vector<16x1xf32> to vector<16x32xf32>
    %43 = arith.mulf %33, %42 : vector<16x32xf32>
    %44 = vector.broadcast %24 : vector<1x32xf32> to vector<16x32xf32>
    %45 = arith.mulf %43, %44 : vector<16x32xf32>
    %46 = vector.broadcast %25 : vector<1x32xf32> to vector<16x32xf32>
    %47 = arith.addf %45, %46 : vector<16x32xf32>
    %cst_22 = arith.constant dense<0.000000e+00> : vector<8x16xf32>
    %48 = tpu.matmul %23, %47, %cst_22 {dimension_numbers = #tpu.dot_dimension_numbers<[1], [1], [0], [0], [0, 0, 1, 0], [], []>} : vector<8x32xf32>, vector<16x32xf32>, vector<8x16xf32> -> vector<8x16xf32>
    %cst_23 = arith.constant dense<0xFF800000> : vector<8xf32>
    %49 = vector.multi_reduction <maximumf>, %48, %cst_23 [1] : vector<8x16xf32> to vector<8xf32>
    %50 = vector.shape_cast %49 : vector<8xf32> to vector<8x1xf32>
    %51 = vector.broadcast %50 : vector<8x1xf32> to vector<8x16xf32>
    %52 = arith.subf %48, %51 : vector<8x16xf32>
    %53 = math.exp %52 : vector<8x16xf32>
    %cst_24 = arith.constant dense<0.000000e+00> : vector<8xf32>
    %54 = vector.multi_reduction <add>, %53, %cst_24 [1] : vector<8x16xf32> to vector<8xf32>
    %55 = vector.shape_cast %54 : vector<8xf32> to vector<8x1xf32>
    %56 = tpu.reciprocal %55 {approx = true} : vector<8x1xf32> -> vector<8x1xf32>
    %cst_25 = arith.constant dense<0.000000e+00> : vector<8x32xf32>
    %57 = tpu.matmul %53, %47, %cst_25 {dimension_numbers = #tpu.dot_dimension_numbers<[1], [0], [0], [1], [0, 0, 1, 1], [], []>} : vector<8x16xf32>, vector<16x32xf32>, vector<8x32xf32> -> vector<8x32xf32>
    %58 = vector.broadcast %56 : vector<8x1xf32> to vector<8x32xf32>
    %59 = arith.mulf %57, %58 : vector<8x32xf32>
    %c0_26 = arith.constant 0 : index
    %c0_27 = arith.constant 0 : index
    %c0_28 = arith.constant 0 : index
    %60 = vector.load %arg8[%c0_26, %c0_27, %c0_28] : memref<1x8x32xf32, #tpu.memory_space<vmem>>, vector<1x8x32xf32>
    %61 = vector.shape_cast %60 : vector<1x8x32xf32> to vector<8x32xf32>
    %62 = vector.shape_cast %59 : vector<8x32xf32> to vector<1x8x32xf32>
    tpu.vector_store %arg8[%c0_26, %c0_27, %c0_28], %62 {strides = array<i32>} : memref<1x8x32xf32, #tpu.memory_space<vmem>>, vector<1x8x32xf32>,
    return
  }
  func.func @transform_0(%arg0: i32, %arg1: i32) -> (i32, i32, i32) {
    %c0_i32 = arith.constant 0 : i32
    %c0_i32_0 = arith.constant 0 : i32
    return %arg0, %arg1, %c0_i32 : i32, i32, i32
  }
  func.func @transform_1(%arg0: i32, %arg1: i32) -> (i32, i32, i32) {
    %c0_i32 = arith.constant 0 : i32
    %c0_i32_0 = arith.constant 0 : i32
    %c0_i32_1 = arith.constant 0 : i32
    return %arg0, %c0_i32, %c0_i32_0 : i32, i32, i32
  }
  func.func @transform_2(%arg0: i32, %arg1: i32) -> (i32, i32) {
    %c0_i32 = arith.constant 0 : i32
    %c0_i32_0 = arith.constant 0 : i32
    %c0_i32_1 = arith.constant 0 : i32
    return %c0_i32, %c0_i32_0 : i32, i32
  }
  func.func @transform_3(%arg0: i32, %arg1: i32) -> (i32, i32) {
    %c0_i32 = arith.constant 0 : i32
    %c0_i32_0 = arith.constant 0 : i32
    %c0_i32_1 = arith.constant 0 : i32
    return %c0_i32, %c0_i32_0 : i32, i32
  }
  func.func @transform_4(%arg0: i32, %arg1: i32) -> (i32, i32) {
    %c0_i32 = arith.constant 0 : i32
    %c0_i32_0 = arith.constant 0 : i32
    %c0_i32_1 = arith.constant 0 : i32
    return %c0_i32, %c0_i32_0 : i32, i32
  }
  func.func @transform_5(%arg0: i32, %arg1: i32) -> (i32, i32) {
    %c0_i32 = arith.constant 0 : i32
    %c0_i32_0 = arith.constant 0 : i32
    %c0_i32_1 = arith.constant 0 : i32
    return %c0_i32, %c0_i32_0 : i32, i32
  }
  func.func @transform_6(%arg0: i32, %arg1: i32) -> (i32, i32, i32) {
    %c0_i32 = arith.constant 0 : i32
    %c0_i32_0 = arith.constant 0 : i32
    return %arg0, %arg1, %c0_i32 : i32, i32, i32
  }
}

</mosaic_0001>

<llo_original>
// kernel: tpu_custom_call.1
$region0: #{tpu_custom_call.1}
  #allocation0 [shape = 'u32[]', space=smem, size = 0x4, offset = 0x4, fixed_abs, tag = 'smem constant byte address 0x4 - core index']
  #allocation1 [shape = 'u32[144,128]{1,0:T(1,128)}', space=vmem, size = 0x12000, scoped, tag = 'internal scratch']
  %s0 = inlined_call_operand.hbm [shape: f32[2,8,32], index: 0, kind: input, shape index: {}]
  %s1 = inlined_call_operand.hbm [shape: f32[2,16,32], index: 1, kind: input, shape index: {}]
  %s2 = inlined_call_operand.vmem [shape: f32[1,32], index: 2, kind: input, shape index: {}]
  %s3 = inlined_call_operand.vmem [shape: f32[1,32], index: 3, kind: input, shape index: {}]
  %s4 = inlined_call_operand.vmem [shape: f32[1,32], index: 4, kind: input, shape index: {}]
  %s5 = inlined_call_operand.vmem [shape: f32[1,32], index: 5, kind: input, shape index: {}]
  %s6 = inlined_call_operand.hbm [shape: f32[2,8,32], index: 6, kind: output, shape index: {}]
  %s7 = sld [smem:[#allocation0]]
  $region65: #{tpu_custom_call.1} parent=0
    _
  %s9 = ssub.s32 1, %s7
  %s10 = scalar_select 0, %s9, %s7
  $region1: #{tpu_custom_call.1} parent=0
    #allocation2 [shape = 'u8[8192]{0}', space=vmem, size = 0x2000, scoped, tag = 'input window, operand 0']
    #allocation3 [shape = 's32[2]{0}', space=sflag, size = 0x8, scoped, tag = 'scoped memory for tpu_custom_call.1']
    #allocation4 [shape = 's32[2]{0}', space=sflag, size = 0x8, scoped, tag = 'scoped memory for tpu_custom_call.1']
    #allocation5 [shape = 'u8[8192]{0}', space=vmem, size = 0x2000, scoped, tag = 'input window, operand 1, single buffered']
    #allocation6 [shape = 's32[1]{0}', space=sflag, size = 0x4, scoped, tag = 'scoped memory for tpu_custom_call.1']
    #allocation7 [shape = 'u8[8192]{0}', space=vmem, size = 0x2000, scoped, tag = 'output window, operand 0']
    %11 = vsyncpa [#allocation3], 0
    %s12 = scalar_lea.sflag [#allocation3], 1
    %13 = vsyncpa %s12, 0
    %14 = vsyncpa [#allocation6], 0
    %15 = vsyncpa [#allocation4], 0
    %s16 = scalar_lea.sflag [#allocation4], 1
    %17 = vsyncpa %s16, 0
    loop: start=0, step=1, limit=4
    $region2: #{tpu_custom_call.1} parent=1 // loop_pre_header
      _
    $region3: #{tpu_custom_call.1} parent=1 // loop_header
      %s19 = sphi 0, %s23
      %p20 = scmp.ge.s32.totalorder %s19, 4
      %s26 = sphi 0, %s38
      %s27 = sphi 0, %s34
      %s28 = sphi 0, %s26
      %s29 = sphi 0, %s27
      %s30 = sphi 0, %s28
      %s31 = sphi 0, %s29
      %s43 = sphi 0, %s45
      %s46 = sphi 0, %s43
      %s47 = sphi 0, %s46
      %s63 = sphi 0, %s47
      %s69 = sphi 0, %s71
      %s72 = sphi 0, %s69
      %s73 = sphi 0, %s72
      %s89 = sphi 0, %s73
      %s93 = sphi 0, %s93
      %s95 = sphi 0, %s93
      %s96 = sphi 0, %s95
      %s110 = sphi 0, %s96
      %s114 = sphi 0, %s114
      %s116 = sphi 0, %s114
      %s117 = sphi 0, %s116
      %s131 = sphi 0, %s117
      %s135 = sphi 0, %s135
      %s137 = sphi 0, %s135
      %s138 = sphi 0, %s137
      %s152 = sphi 0, %s138
      %s156 = sphi 0, %s156
      %s158 = sphi 0, %s156
      %s159 = sphi 0, %s158
      %s173 = sphi 0, %s159
      %s181 = sphi 0, %s183
      %s184 = sphi 0, %s181
      %s185 = sphi 0, %s184
      %s201 = sphi 0, %s185
    $region4: #{tpu_custom_call.1} parent=1 // loop_header_branch
      %22 = sbr.rel (%p20) target = $region8
    $region5: #{tpu_custom_call.1} parent=1 // loop_body
      %s24 = ssub.s32 %s19, 1
      %s25 = ssub.s32 %s19, 2
      %s32 = sadd.s32 1, %s27
      %p33 = scmp.ge.s32.totalorder %s32, 1
      %s34 = scalar_select %p33, 0, %s32
      %s35 = sadd.s32 1, %s26
      %s36 = scalar_select %p33, %s35, %s26
      %p37 = scmp.ge.s32.totalorder %s36, 2
      %s38 = scalar_select %p37, 0, %s36
      %s39 = ssub.s32 %s26, %s38
      %s40 = ssub.s32 %s27, %s34
      %s41 = sor.u32 %s39, %s40
      %p42 = scmp.eq.s32.totalorder %s41, 0
      %s44 = sadd.s32 %s43, 1
      %s45 = scalar_select %p42, %s43, %s44
      %p48 = pneg %p42
      %p49 = scmp.eq.s32.totalorder %s19, 1
      %p50 = por %p48, %p49
      %p51 = scmp.ne.s32.totalorder %s43, %s46
      %p52 = scmp.eq.s32.totalorder %s19, 0
      %p53 = por %p51, %p52
      %p54 = scmp.ne.s32.totalorder %s43, %s46
      %p55 = scmp.eq.s32.totalorder %s24, 1
      %p56 = por %p54, %p55
      %p57 = scmp.ne.s32.totalorder %s46, %s47
      %p58 = scmp.eq.s32.totalorder %s24, 0
      %p59 = por %p57, %p58
      %p60 = scmp.ne.s32.totalorder %s46, %s47
      %p61 = scmp.eq.s32.totalorder %s25, 1
      %p62 = por %p60, %p61
      %p64 = scmp.ne.s32.totalorder %s47, %s63
      %p65 = scmp.eq.s32.totalorder %s25, 0
      %p66 = por %p64, %p65
      %s67 = ssub.s32 %s26, %s38
      %p68 = scmp.eq.s32.totalorder %s67, 0
      %s70 = sadd.s32 %s69, 1
      %s71 = scalar_select %p68, %s69, %s70
      %p74 = pneg %p68
      %p75 = scmp.eq.s32.totalorder %s19, 1
      %p76 = por %p74, %p75
      %p77 = scmp.ne.s32.totalorder %s69, %s72
      %p78 = scmp.eq.s32.totalorder %s19, 0
      %p79 = por %p77, %p78
      %p80 = scmp.ne.s32.totalorder %s69, %s72
      %p81 = scmp.eq.s32.totalorder %s24, 1
      %p82 = por %p80, %p81
      %p83 = scmp.ne.s32.totalorder %s72, %s73
      %p84 = scmp.eq.s32.totalorder %s24, 0
      %p85 = por %p83, %p84
      %p86 = scmp.ne.s32.totalorder %s72, %s73
      %p87 = scmp.eq.s32.totalorder %s25, 1
      %p88 = por %p86, %p87
      %p90 = scmp.ne.s32.totalorder %s73, %s89
      %p91 = scmp.eq.s32.totalorder %s25, 0
      %p92 = por %p90, %p91
      %s94 = sadd.s32 %s93, 1
      %p97 = scmp.eq.s32.totalorder %s19, 1
      %p98 = scmp.ne.s32.totalorder %s93, %s95
      %p99 = scmp.eq.s32.totalorder %s19, 0
      %p100 = por %p98, %p99
      %p101 = scmp.ne.s32.totalorder %s93, %s95
      %p102 = scmp.eq.s32.totalorder %s24, 1
      %p103 = por %p101, %p102
      %p104 = scmp.ne.s32.totalorder %s95, %s96
      %p105 = scmp.eq.s32.totalorder %s24, 0
      %p106 = por %p104, %p105
      %p107 = scmp.ne.s32.totalorder %s95, %s96
      %p108 = scmp.eq.s32.totalorder %s25, 1
      %p109 = por %p107, %p108
      %p111 = scmp.ne.s32.totalorder %s96, %s110
      %p112 = scmp.eq.s32.totalorder %s25, 0
      %p113 = por %p111, %p112
      %s115 = sadd.s32 %s114, 1
      %p118 = scmp.eq.s32.totalorder %s19, 1
      %p119 = scmp.ne.s32.totalorder %s114, %s116
      %p120 = scmp.eq.s32.totalorder %s19, 0
      %p121 = por %p119, %p120
      %p122 = scmp.ne.s32.totalorder %s114, %s116
      %p123 = scmp.eq.s32.totalorder %s24, 1
      %p124 = por %p122, %p123
      %p125 = scmp.ne.s32.totalorder %s116, %s117
      %p126 = scmp.eq.s32.totalorder %s24, 0
      %p127 = por %p125, %p126
      %p128 = scmp.ne.s32.totalorder %s116, %s117
      %p129 = scmp.eq.s32.totalorder %s25, 1
      %p130 = por %p128, %p129
      %p132 = scmp.ne.s32.totalorder %s117, %s131
      %p133 = scmp.eq.s32.totalorder %s25, 0
      %p134 = por %p132, %p133
      %s136 = sadd.s32 %s135, 1
      %p139 = scmp.eq.s32.totalorder %s19, 1
      %p140 = scmp.ne.s32.totalorder %s135, %s137
      %p141 = scmp.eq.s32.totalorder %s19, 0
      %p142 = por %p140, %p141
      %p143 = scmp.ne.s32.totalorder %s135, %s137
      %p144 = scmp.eq.s32.totalorder %s24, 1
      %p145 = por %p143, %p144
      %p146 = scmp.ne.s32.totalorder %s137, %s138
      %p147 = scmp.eq.s32.totalorder %s24, 0
      %p148 = por %p146, %p147
      %p149 = scmp.ne.s32.totalorder %s137, %s138
      %p150 = scmp.eq.s32.totalorder %s25, 1
      %p151 = por %p149, %p150
      %p153 = scmp.ne.s32.totalorder %s138, %s152
      %p154 = scmp.eq.s32.totalorder %s25, 0
      %p155 = por %p153, %p154
      %s157 = sadd.s32 %s156, 1
      %p160 = scmp.eq.s32.totalorder %s19, 1
      %p161 = scmp.ne.s32.totalorder %s156, %s158
      %p162 = scmp.eq.s32.totalorder %s19, 0
      %p163 = por %p161, %p162
      %p164 = scmp.ne.s32.totalorder %s156, %s158
      %p165 = scmp.eq.s32.totalorder %s24, 1
      %p166 = por %p164, %p165
      %p167 = scmp.ne.s32.totalorder %s158, %s159
      %p168 = scmp.eq.s32.totalorder %s24, 0
      %p169 = por %p167, %p168
      %p170 = scmp.ne.s32.totalorder %s158, %s159
      %p171 = scmp.eq.s32.totalorder %s25, 1
      %p172 = por %p170, %p171
      %p174 = scmp.ne.s32.totalorder %s159, %s173
      %p175 = scmp.eq.s32.totalorder %s25, 0
      %p176 = por %p174, %p175
      %s177 = ssub.s32 %s26, %s38
      %s178 = ssub.s32 %s27, %s34
      %s179 = sor.u32 %s177, %s178
      %p180 = scmp.eq.s32.totalorder %s179, 0
      %s182 = sadd.s32 %s181, 1
      %s183 = scalar_select %p180, %s181, %s182
      %p186 = pneg %p180
      %p187 = scmp.eq.s32.totalorder %s19, 1
      %p188 = por %p186, %p187
      %p189 = scmp.ne.s32.totalorder %s181, %s184
      %p190 = scmp.eq.s32.totalorder %s19, 0
      %p191 = por %p189, %p190
      %p192 = scmp.ne.s32.totalorder %s181, %s184
      %p193 = scmp.eq.s32.totalorder %s24, 1
      %p194 = por %p192, %p193
      %p195 = scmp.ne.s32.totalorder %s184, %s185
      %p196 = scmp.eq.s32.totalorder %s24, 0
      %p197 = por %p195, %p196
      %p198 = scmp.ne.s32.totalorder %s184, %s185
      %p199 = scmp.eq.s32.totalorder %s25, 1
      %p200 = por %p198, %p199
      %p202 = scmp.ne.s32.totalorder %s185, %s201
      %p203 = scmp.eq.s32.totalorder %s25, 0
      %p204 = por %p202, %p203
      %p205 = scmp.le.s32.totalorder 1, %s19
      %p206 = scmp.lt.s32.totalorder %s19, 3
      %p207 = pnand %p205, %p206
      %p208 = pneg %p207
      // Predicated region
      $region9: #{tpu_custom_call.1} parent=5 // pred_check
        _
      $region10: #{tpu_custom_call.1} parent=5 // pred_check_branch
        %210 = sbr.rel (%p207) target = $region12
      $region11: #{tpu_custom_call.1} parent=5 // pred_region
        %s211 = ssub.s32 %s19, 1
        // Predicated region
        $region13: #{tpu_custom_call.1} parent=11 // pred_check
          %p212 = pneg %p85
        $region14: #{tpu_custom_call.1} parent=11 // pred_check_branch
          %214 = sbr.rel (%p212) target = $region16
        $region15: #{tpu_custom_call.1} parent=11 // pred_region
          %s216 = ssub.s32 256, 256
          %217 = vsyncadd [#allocation6], %s216
          %s218 = smul.addr %s28, 2
          %s219 = smul.addr %s218, 128
          %s220 = scalar_lea.hbm %s1, %s219
          %s221 = sshll.u32 [#allocation5], 4
          %s222 = int_to_ptr.vmem [resolvable:$true] %s221
          %227 = dma.hbm_to_vmem [thread:$0]  %s220, 256, %s222, [#allocation6], 128, 128, 8
        $region16: #{tpu_custom_call.1} parent=11 // pred_fallthru
          _
        // Predicated region
        $region17: #{tpu_custom_call.1} parent=11 // pred_check
          %p228 = pneg %p106
        $region18: #{tpu_custom_call.1} parent=11 // pred_check_branch
          %230 = sbr.rel (%p228) target = $region20
        $region19: #{tpu_custom_call.1} parent=11 // pred_region
          _
        $region20: #{tpu_custom_call.1} parent=11 // pred_fallthru
          _
        // Predicated region
        $region21: #{tpu_custom_call.1} parent=11 // pred_check
          %p231 = pneg %p127
        $region22: #{tpu_custom_call.1} parent=11 // pred_check_branch
          %233 = sbr.rel (%p231) target = $region24
        $region23: #{tpu_custom_call.1} parent=11 // pred_region
          _
        $region24: #{tpu_custom_call.1} parent=11 // pred_fallthru
          _
        // Predicated region
        $region25: #{tpu_custom_call.1} parent=11 // pred_check
          %p234 = pneg %p148
        $region26: #{tpu_custom_call.1} parent=11 // pred_check_branch
          %236 = sbr.rel (%p234) target = $region28
        $region27: #{tpu_custom_call.1} parent=11 // pred_region
          _
        $region28: #{tpu_custom_call.1} parent=11 // pred_fallthru
          _
        // Predicated region
        $region29: #{tpu_custom_call.1} parent=11 // pred_check
          %p237 = pneg %p169
        $region30: #{tpu_custom_call.1} parent=11 // pred_check_branch
          %239 = sbr.rel (%p237) target = $region32
        $region31: #{tpu_custom_call.1} parent=11 // pred_region
          _
        $region32: #{tpu_custom_call.1} parent=11 // pred_fallthru
          _
      $region12: #{tpu_custom_call.1} parent=5 // pred_fallthru
        _
      %p240 = scmp.lt.s32.totalorder %s19, 2
      // Predicated region
      $region33: #{tpu_custom_call.1} parent=5 // pred_check
        %p241 = pneg %p240
      $region34: #{tpu_custom_call.1} parent=5 // pred_check_branch
        %243 = sbr.rel (%p241) target = $region36
      $region35: #{tpu_custom_call.1} parent=5 // pred_region
        // Predicated region
        $region37: #{tpu_custom_call.1} parent=35 // pred_check
          %p244 = pneg %p53
        $region38: #{tpu_custom_call.1} parent=35 // pred_check_branch
          %246 = sbr.rel (%p244) target = $region40
        $region39: #{tpu_custom_call.1} parent=35 // pred_region
          %s247 = sand.u32 %s43, 1
          %s248 = scalar_lea.sflag [#allocation3], %s247
          %s249 = sand.u32 %s43, 1
          %s250 = smul.addr %s249, 8
          %s251 = scalar_lea.vmem [#allocation2], %s250
          %s253 = ssub.s32 128, 128
          %254 = vsyncadd %s248, %s253
          %s255 = sadd.s32 %s27, %s26
          %s256 = smul.addr %s255, 128
          %s257 = scalar_lea.hbm %s0, %s256
          %s259 = sshll.u32 %s251, 4
          %s260 = int_to_ptr.vmem [resolvable:$true] %s259
          %262 = dma.hbm_to_vmem [thread:$0]  %s257, 128, %s260, %s248
        $region40: #{tpu_custom_call.1} parent=35 // pred_fallthru
          _
      $region36: #{tpu_custom_call.1} parent=5 // pred_fallthru
        _
      %p263 = scmp.le.s32.totalorder 1, %s19
      %p264 = scmp.lt.s32.totalorder %s19, 3
      %p265 = pnand %p263, %p264
      %p266 = pneg %p265
      // Predicated region
      $region41: #{tpu_custom_call.1} parent=5 // pred_check
        _
      $region42: #{tpu_custom_call.1} parent=5 // pred_check_branch
        %268 = sbr.rel (%p265) target = $region44
      $region43: #{tpu_custom_call.1} parent=5 // pred_region
        %s269 = ssub.s32 %s19, 1
        %s270 = sand.u32 %s46, 1
        %s271 = scalar_lea.sflag [#allocation3], %s270
        %s272 = sand.u32 %s46, 1
        %s273 = smul.addr %s272, 8
        %s274 = scalar_lea.vmem [#allocation2], %s273
        // Predicated region
        $region45: #{tpu_custom_call.1} parent=43 // pred_check
          %p275 = pneg %p59
        $region46: #{tpu_custom_call.1} parent=43 // pred_check_branch
          %277 = sbr.rel (%p275) target = $region48
        $region47: #{tpu_custom_call.1} parent=43 // pred_region
          %278 = dma.done %s271, 128
        $region48: #{tpu_custom_call.1} parent=43 // pred_fallthru
          _
        // Predicated region
        $region49: #{tpu_custom_call.1} parent=43 // pred_check
          %p279 = pneg %p85
        $region50: #{tpu_custom_call.1} parent=43 // pred_check_branch
          %281 = sbr.rel (%p279) target = $region52
        $region51: #{tpu_custom_call.1} parent=43 // pred_region
          %282 = dma.done [#allocation6], 256
        $region52: #{tpu_custom_call.1} parent=43 // pred_fallthru
          _
        %s283 = sand.u32 %s46, 1
        %s284 = scalar_lea.sflag [#allocation3], %s283
        %s285 = sand.u32 %s46, 1
        %s286 = smul.addr %s285, 8
        %s287 = scalar_lea.vmem [#allocation2], %s286
        %p288 = pneg %p59
        %p289 = pneg %p56
        %p290 = pneg %p85
        %p291 = pneg %p82
        %p292 = pneg %p106
        %p293 = pneg %p103
        %p294 = pneg %p127
        %p295 = pneg %p124
        %p296 = pneg %p148
        %p297 = pneg %p145
        %p298 = pneg %p169
        %p299 = pneg %p166
        %p300 = pneg %p197
        %p301 = pneg %p194
        %s302 = sand.u32 %s184, 1
        %s303 = scalar_lea.sflag [#allocation4], %s302
        %s304 = sand.u32 %s184, 1
        %s305 = smul.addr %s304, 8
        %s306 = scalar_lea.vmem [#allocation7], %s305
        %v307 = vld [vmem:[%s2] sm:$0x1]
        %v308 = vld [vmem:[%s3] sm:$0x1]
        %v309 = vld [vmem:[%s274] sm:$0xff]
        %vm310 = vcmask 261120
        %v311 = vsel %vm310, %v309, 0.0
        %312 = vadd.xlane.f32.xlu0 %v311
        %v313 = vpop.xlane.xlu0 %312
        %v314 = vrcp.pop 32.0
        %v315 = vmul.f32 %v313, %v314
        %v316 = vsub.f32 %v309, %v315
        %v317 = vmul.f32 %v316, %v316
        %v318 = vsel %vm310, %v317, 0.0
        %319 = vadd.xlane.f32.xlu0 %v318
        %v320 = vpop.xlane.xlu0 %319
        %v321 = vmul.f32 %v320, %v314
        %v322 = vadd.f32 %v321, 1e-05
        %v323 = vrsqrt.pop %v322
        %v324 = vmul.f32 %v316, %v323
        %v326 = vlaneseq
        %v327 = vshrl.u32 %v326, 7
        %v328 = vsub.s32 0, %v327
        %v329 = vrot.slane %v307, %v328
        %v331 = vmul.f32 %v324, %v329
        %v333 = vlaneseq
        %v334 = vshrl.u32 %v333, 7
        %v335 = vsub.s32 0, %v334
        %v336 = vrot.slane %v308, %v335
        %v338 = vadd.f32 %v331, %v336
        %v339 = vld [vmem:[%s4] sm:$0x1]
        %v340 = vld [vmem:[%s5] sm:$0x1]
        %v341 = vld [vmem:[#allocation5] sm:$0xff]
        %v342 = vld [vmem:[#allocation5 + $0x8] sm:$0xff]
        %v343 = vsel %vm310, %v341, 0.0
        %344 = vadd.xlane.f32.xlu0 %v343
        %v345 = vpop.xlane.xlu0 %344
        %v346 = vsel %vm310, %v342, 0.0
        %347 = vadd.xlane.f32.xlu0 %v346
        %v348 = vpop.xlane.xlu0 %347
        %v349 = vmul.f32 %v345, %v314
        %v350 = vmul.f32 %v348, %v314
        %v351 = vsub.f32 %v341, %v349
        %v352 = vsub.f32 %v342, %v350
        %v353 = vmul.f32 %v351, %v351
        %v354 = vmul.f32 %v352, %v352
        %v355 = vsel %vm310, %v353, 0.0
        %356 = vadd.xlane.f32.xlu0 %v355
        %v357 = vpop.xlane.xlu0 %356
        %v358 = vsel %vm310, %v354, 0.0
        %359 = vadd.xlane.f32.xlu0 %v358
        %v360 = vpop.xlane.xlu0 %359
        %v361 = vmul.f32 %v357, %v314
        %v362 = vmul.f32 %v360, %v314
        %v363 = vadd.f32 %v361, 1e-05
        %v364 = vadd.f32 %v362, 1e-05
        %v365 = vrsqrt.pop %v363
        %v366 = vrsqrt.pop %v364
        %v367 = vmul.f32 %v351, %v365
        %v368 = vmul.f32 %v352, %v366
        %v370 = vlaneseq
        %v371 = vshrl.u32 %v370, 7
        %v372 = vsub.s32 0, %v371
        %v373 = vrot.slane %v339, %v372
        %v375 = vmul.f32 %v367, %v373
        %v376 = vmul.f32 %v368, %v373
        %v378 = vlaneseq
        %v379 = vshrl.u32 %v378, 7
        %v380 = vsub.s32 0, %v379
        %v381 = vrot.slane %v340, %v380
        %v383 = vadd.f32 %v375, %v381
        %v384 = vadd.f32 %v376, %v381
        %v386 = vsel %vm310, %v338, 0
        %v389 = vsel %vm310, %v383, 0
        %v392 = vsel %vm310, %v384, 0
        %394 = vmatprep.subr.mxu0 0.0
        %395 = vmatpush1.xpose.msra.mxu0 0.0
        %396 = vmatprep.subr.mxu0 0.0
        %397 = vmatpush1.xpose.msra.mxu0 0.0
        %398 = vmatprep.subr.mxu0 0.0
        %399 = vmatpush1.xpose.msra.mxu0 0.0
        %400 = vmatprep.subr.mxu0 0.0
        %401 = vmatpush1.xpose.msra.mxu0 0.0
        %402 = vmatprep.subr.mxu0 0.0
        %403 = vmatpush1.xpose.msra.mxu0 0.0
        %404 = vmatprep.subr.mxu0 0.0
        %405 = vmatpush1.xpose.msra.mxu0 0.0
        %406 = vmatprep.subr.mxu0 0.0
        %407 = vmatpush1.xpose.msra.mxu0 0.0
        %408 = vmatprep.subr.mxu0 0.0
        %409 = vmatpush1.xpose.msra.mxu0 0.0
        %410 = vmatprep.subr.mxu0 0.0
        %411 = vmatpush1.xpose.msra.mxu0 0.0
        %412 = vmatprep.subr.mxu0 0.0
        %413 = vmatpush1.xpose.msra.mxu0 0.0
        %414 = vmatprep.subr.mxu0 0.0
        %415 = vmatpush1.xpose.msra.mxu0 0.0
        %416 = vmatprep.subr.mxu0 0.0
        %417 = vmatpush1.xpose.msra.mxu0 0.0
        %418 = vmatprep.subr.mxu0 0.0
        %419 = vmatpush1.xpose.msra.mxu0 0.0
        %420 = vmatprep.subr.mxu0 0.0
        %421 = vmatpush1.xpose.msra.mxu0 0.0
        %422 = vmatprep.subr.mxu0 0.0
        %423 = vmatpush1.xpose.msra.mxu0 %v392
        %424 = vmatprep.subr.mxu0 0.0
        %425 = vmatpush1.xpose.msra.mxu0 %v389
        %426 = vmatprep.subr.mxu0 0.0
        %427 = vmatpush2.xpose.msra.mxu0 0.0
        %428 = vmatprep.subr.mxu0 0.0
        %429 = vmatpush2.xpose.msra.mxu0 0.0
        %430 = vmatprep.subr.mxu0 0.0
        %431 = vmatpush2.xpose.msra.mxu0 0.0
        %432 = vmatprep.subr.mxu0 0.0
        %433 = vmatpush2.xpose.msra.mxu0 0.0
        %434 = vmatprep.subr.mxu0 0.0
        %435 = vmatpush2.xpose.msra.mxu0 0.0
        %436 = vmatprep.subr.mxu0 0.0
        %437 = vmatpush2.xpose.msra.mxu0 0.0
        %438 = vmatprep.subr.mxu0 0.0
        %439 = vmatpush2.xpose.msra.mxu0 0.0
        %440 = vmatprep.subr.mxu0 0.0
        %441 = vmatpush2.xpose.msra.mxu0 0.0
        %442 = vmatprep.subr.mxu0 0.0
        %443 = vmatpush2.xpose.msra.mxu0 0.0
        %444 = vmatprep.subr.mxu0 0.0
        %445 = vmatpush2.xpose.msra.mxu0 0.0
        %446 = vmatprep.subr.mxu0 0.0
        %447 = vmatpush2.xpose.msra.mxu0 0.0
        %448 = vmatprep.subr.mxu0 0.0
        %449 = vmatpush2.xpose.msra.mxu0 0.0
        %450 = vmatprep.subr.mxu0 0.0
        %451 = vmatpush2.xpose.msra.mxu0 0.0
        %452 = vmatprep.subr.mxu0 0.0
        %453 = vmatpush2.xpose.msra.mxu0 0.0
        %454 = vmatprep.subr.mxu0 0.0
        %455 = vmatpush2.xpose.msra.mxu0 0.0
        %456 = vmatprep.subr.mxu0 0.0
        %457 = vmatpush2.xpose.msra.mxu0 0.0
        %458 = vmatprep.mubr.f32.mxu0 0.0
        %459 = vmatmul.mubr.f32.gmra.mxu0 %v386
        %v460 = vpop.f32.mrf.mxu0
        %v461 = vadd.f32 0.0, %v460
        %v462 = vpop.f32.mrf.mxu0
        %463 = vdwg.mxu0
        %vm464 = vcmask 130048
        %v465 = vsel %vm464, %v461, -inf
        %466 = vmax.xlane.f32.xlu0 %v465
        %v467 = vpop.xlane.xlu0 %466
        %v468 = vsub.f32 %v461, %v467
        %v469 = vmul.f32 %v468, 1.442695
        %v470 = vpow.pop %v469
        %v471 = vsel %vm464, %v470, 0.0
        %472 = vadd.xlane.f32.xlu0 %v471
        %v473 = vpop.xlane.xlu0 %472
        %v474 = vrcp.pop %v473
        %v476 = vsel %vm464, %v470, 0
        %478 = vmatprep.subr.mxu0 0.0
        %479 = vmatpush1.msra.mxu0 0.0
        %480 = vmatprep.subr.mxu0 0.0
        %481 = vmatpush1.msra.mxu0 0.0
        %482 = vmatprep.subr.mxu0 0.0
        %483 = vmatpush1.msra.mxu0 0.0
        %484 = vmatprep.subr.mxu0 0.0
        %485 = vmatpush1.msra.mxu0 0.0
        %486 = vmatprep.subr.mxu0 0.0
        %487 = vmatpush1.msra.mxu0 0.0
        %488 = vmatprep.subr.mxu0 0.0
        %489 = vmatpush1.msra.mxu0 0.0
        %490 = vmatprep.subr.mxu0 0.0
        %491 = vmatpush1.msra.mxu0 0.0
        %492 = vmatprep.subr.mxu0 0.0
        %493 = vmatpush1.msra.mxu0 0.0
        %494 = vmatprep.subr.mxu0 0.0
        %495 = vmatpush1.msra.mxu0 0.0
        %496 = vmatprep.subr.mxu0 0.0
        %497 = vmatpush1.msra.mxu0 0.0
        %498 = vmatprep.subr.mxu0 0.0
        %499 = vmatpush1.msra.mxu0 0.0
        %500 = vmatprep.subr.mxu0 0.0
        %501 = vmatpush1.msra.mxu0 0.0
        %502 = vmatprep.subr.mxu0 0.0
        %503 = vmatpush1.msra.mxu0 0.0
        %504 = vmatprep.subr.mxu0 0.0
        %505 = vmatpush1.msra.mxu0 0.0
        %506 = vmatprep.subr.mxu0 0.0
        %507 = vmatpush1.msra.mxu0 %v384
        %508 = vmatprep.subr.mxu0 0.0
        %509 = vmatpush1.msra.mxu0 %v383
        %510 = vmatprep.subr.mxu0 0.0
        %511 = vmatpush2.msra.mxu0 0.0
        %512 = vmatprep.subr.mxu0 0.0
        %513 = vmatpush2.msra.mxu0 0.0
        %514 = vmatprep.subr.mxu0 0.0
        %515 = vmatpush2.msra.mxu0 0.0
        %516 = vmatprep.subr.mxu0 0.0
        %517 = vmatpush2.msra.mxu0 0.0
        %518 = vmatprep.subr.mxu0 0.0
        %519 = vmatpush2.msra.mxu0 0.0
        %520 = vmatprep.subr.mxu0 0.0
        %521 = vmatpush2.msra.mxu0 0.0
        %522 = vmatprep.subr.mxu0 0.0
        %523 = vmatpush2.msra.mxu0 0.0
        %524 = vmatprep.subr.mxu0 0.0
        %525 = vmatpush2.msra.mxu0 0.0
        %526 = vmatprep.subr.mxu0 0.0
        %527 = vmatpush2.msra.mxu0 0.0
        %528 = vmatprep.subr.mxu0 0.0
        %529 = vmatpush2.msra.mxu0 0.0
        %530 = vmatprep.subr.mxu0 0.0
        %531 = vmatpush2.msra.mxu0 0.0
        %532 = vmatprep.subr.mxu0 0.0
        %533 = vmatpush2.msra.mxu0 0.0
        %534 = vmatprep.subr.mxu0 0.0
        %535 = vmatpush2.msra.mxu0 0.0
        %536 = vmatprep.subr.mxu0 0.0
        %537 = vmatpush2.msra.mxu0 0.0
        %538 = vmatprep.subr.mxu0 0.0
        %539 = vmatpush2.msra.mxu0 0.0
        %540 = vmatprep.subr.mxu0 0.0
        %541 = vmatpush2.msra.mxu0 0.0
        %542 = vmatprep.mubr.f32.mxu0 0.0
        %543 = vmatmul.mubr.f32.gmra.mxu0 %v476
        %v544 = vpop.f32.mrf.mxu0
        %v545 = vadd.f32 0.0, %v544
        %v546 = vpop.f32.mrf.mxu0
        %547 = vdwg.mxu0
        %v548 = vmul.f32 %v545, %v474
        %549 = vst.msk [vmem:[%s306] sm:$0xff] %vm310, %v548
        %s550 = sand.u32 %s184, 1
        %s551 = scalar_lea.sflag [#allocation4], %s550
        %s552 = sand.u32 %s184, 1
        %s553 = smul.addr %s552, 8
        %s554 = scalar_lea.vmem [#allocation7], %s553
        // Predicated region
        $region53: #{tpu_custom_call.1} parent=43 // pred_check
          %p555 = pneg %p194
        $region54: #{tpu_custom_call.1} parent=43 // pred_check_branch
          %557 = sbr.rel (%p555) target = $region56
        $region55: #{tpu_custom_call.1} parent=43 // pred_region
          %s559 = ssub.s32 128, 128
          %560 = vsyncadd %s551, %s559
          %s561 = sadd.s32 %s29, %s28
          %s562 = smul.addr %s561, 128
          %s563 = scalar_lea.hbm %s6, %s562
          %s565 = sshll.u32 %s554, 4
          %s566 = int_to_ptr.vmem [resolvable:$true] %s565
          %568 = dma.vmem_to_hbm [thread:$0]  %s566, 128, %s563, %s551
        $region56: #{tpu_custom_call.1} parent=43 // pred_fallthru
          _
      $region44: #{tpu_custom_call.1} parent=5 // pred_fallthru
        _
      %p569 = scmp.le.s32.totalorder 2, %s19
      // Predicated region
      $region57: #{tpu_custom_call.1} parent=5 // pred_check
        %p570 = pneg %p569
      $region58: #{tpu_custom_call.1} parent=5 // pred_check_branch
        %572 = sbr.rel (%p570) target = $region60
      $region59: #{tpu_custom_call.1} parent=5 // pred_region
        %s573 = ssub.s32 %s19, 2
        // Predicated region
        $region61: #{tpu_custom_call.1} parent=59 // pred_check
          %p574 = pneg %p200
        $region62: #{tpu_custom_call.1} parent=59 // pred_check_branch
          %576 = sbr.rel (%p574) target = $region64
        $region63: #{tpu_custom_call.1} parent=59 // pred_region
          %s577 = sand.u32 %s185, 1
          %s578 = scalar_lea.sflag [#allocation4], %s577
          %s579 = sand.u32 %s185, 1
          %s580 = smul.addr %s579, 8
          %s581 = scalar_lea.vmem [#allocation7], %s580
          %582 = dma.done %s578, 128
        $region64: #{tpu_custom_call.1} parent=59 // pred_fallthru
          _
      $region60: #{tpu_custom_call.1} parent=5 // pred_fallthru
        _
    $region6: #{tpu_custom_call.1} parent=1 // loop_footer
      %s23 = sadd.s32 1, %s19
    $region7: #{tpu_custom_call.1} parent=1 // loop_footer_branch
      %18 = sbr.rel target = $region3
    $region8: #{tpu_custom_call.1} parent=1 // loop_exit
      _
    %583 = vsyncpa [#allocation3], 1
    %s584 = scalar_lea.sflag [#allocation3], 1
    %585 = vsyncpa %s584, 1
    %586 = vsyncpa [#allocation6], 1
    %587 = vsyncpa [#allocation4], 1
    %s588 = scalar_lea.sflag [#allocation4], 1
    %589 = vsyncpa %s588, 1

</llo_original>
